<compile_context>
chip_gen: v7x
topology: tpu7x:2x2x1
jax: 0.10.0
libtpu: 0.0.40
codegen_flags: <defaults>
</compile_context>

<pallas_src>
import functools

import jax
import jax.numpy as jnp
from jax.experimental import pallas as pl
from jax.experimental.pallas import tpu as pltpu

SUBLANE = 8  # f32 sublane packing; x / out stay f32 in HBM


def _round_up(x, m):
    return ((x + m - 1) // m) * m


# ---------------- Pallas kernel ----------------
def _mlp_kernel(x_ref, *refs, num_layers: int, neg_slope: float, compute_dtype):
    # refs = (w0, b0, w1, b1, ..., w_{L-1}, b_{L-1}, out_ref)
    out_ref = refs[-1]
    wb = refs[:-1]
    h = x_ref[...].astype(compute_dtype)            # cast (if any) on the VPU
    for i in range(num_layers):
        w = wb[2 * i][...].astype(compute_dtype)    # VMEM-resident, native shape
        b = wb[2 * i + 1][...]                      # (1, out_i) f32
        a = jnp.dot(h, w, preferred_element_type=jnp.float32) + b
        a = jnp.where(a > 0, a, neg_slope * a)      # leaky_relu(0.01), f32 VPU
        if i < num_layers - 1:
            h = a.astype(compute_dtype)
        else:
            out_ref[...] = a.astype(out_ref.dtype)


# ---------------- wrapper ----------------
def calibnet_forward(x, weights, biases, *, batch_tile=None,
                     compute_dtype=jnp.float32, out_dtype=None):
    """CalibNet.forward == classifier MLP forward, as a single Pallas TPU kernel.

    x:       (B, input_size)
    weights: list of (in_i, out_i) arrays
    biases:  list of (out_i,) arrays
    """
    B, input_size = x.shape
    num_layers = len(weights)
    out_dtype = x.dtype if out_dtype is None else out_dtype

    dims = [weights[0].shape[0]] + [w.shape[1] for w in weights]
    output_size = dims[-1]
    assert input_size == dims[0]

    # --- batch tiling: fat tiles for the HBM roofline, but >= 2 grid steps
    #     whenever possible so megacore/v7x can shard the "parallel" axis. ---
    if batch_tile is None:
        if B >= 2 * SUBLANE:
            batch_tile = min(2048, _round_up(pl.cdiv(B, 2), SUBLANE))
        else:
            batch_tile = _round_up(max(B, 1), SUBLANE)
    batch_tile = max(SUBLANE, _round_up(batch_tile, SUBLANE))
    grid = (pl.cdiv(B, batch_tile),)

    # x / out are pipelined batch tiles at NATIVE feature widths (last block dim
    # equals the full array dim -> legal without 128-lane padding).
    in_specs = [pl.BlockSpec((batch_tile, input_size), lambda i: (i, 0))]
    in_specs += [pl.BlockSpec(memory_space=pltpu.MemorySpace.VMEM)
                 for _ in range(2 * num_layers)]
    out_spec = pl.BlockSpec((batch_tile, output_size), lambda i: (i, 0))

    # Params at native shapes/dtypes (no per-call pad/cast XLA passes).
    wb_args = []
    for w, b in zip(weights, biases):
        wb_args.append(w)
        wb_args.append(b.reshape(1, -1))        # (1, out_i) for broadcast add

    # VMEM budget: double-buffered x/out tiles + resident params + f32 work set.
    x_bytes = jnp.dtype(x.dtype).itemsize
    o_bytes = jnp.dtype(out_dtype).itemsize
    resident = sum(int(a.size) * a.dtype.itemsize for a in wb_args)
    work = 2 * batch_tile * max(dims) * 4
    need = (2 * batch_tile * (input_size * x_bytes + output_size * o_bytes)
            + resident + work)
    try:
        vmem_cap = int(pltpu.get_tpu_info().vmem_capacity_bytes)
    except Exception:
        vmem_cap = 64 * 2**20                   # conservative (v7x per-TC size)
    vmem_limit = int(min(vmem_cap // 2, max(16 * 2**20, 2 * need)))

    # Advisory cost from TRUE (unpadded) dims.
    flops = 2 * B * sum(dims[i] * dims[i + 1] for i in range(num_layers))
    bytes_accessed = (B * input_size * x_bytes + B * output_size * o_bytes
                      + resident)

    kernel = functools.partial(_mlp_kernel, num_layers=num_layers,
                               neg_slope=0.01, compute_dtype=compute_dtype)

    return pl.pallas_call(
        kernel,
        out_shape=jax.ShapeDtypeStruct((B, output_size), out_dtype),
        grid=grid,
        in_specs=in_specs,
        out_specs=out_spec,
        compiler_params=pltpu.CompilerParams(
            dimension_semantics=("parallel",),
            vmem_limit_bytes=vmem_limit,
        ),
        cost_estimate=pl.CostEstimate(flops=flops, transcendentals=0,
                                      bytes_accessed=bytes_accessed),
    )(x, *wb_args)


# ---------------- deterministic parameter init ----------------
def xavier_uniform(key, fan_in, fan_out, dtype=jnp.float32):
    limit = (6.0 / (fan_in + fan_out)) ** 0.5
    return jax.random.uniform(key, (fan_in, fan_out), dtype, -limit, limit)


def init_mlp_params(key, input_size, ewidths, edepth, output_size):
    layer_sizes = [input_size] + edepth * [ewidths] + [output_size]
    weights, biases = [], []
    for i in range(len(layer_sizes) - 1):
        key, wk, bk = jax.random.split(key, 3)
        fan_in, fan_out = layer_sizes[i], layer_sizes[i + 1]
        weights.append(xavier_uniform(wk, fan_in, fan_out))
        bound = 1.0 / (fan_in ** 0.5)   # PyTorch nn.Linear default bias init
        biases.append(jax.random.uniform(bk, (fan_out,), jnp.float32, -bound, bound))
    return weights, biases


# ---------------- reference (plain JAX, f32) ----------------
def ref_forward(x, weights, biases):
    h = x.astype(jnp.float32)
    for w, b in zip(weights, biases):
        a = jnp.dot(h, w.astype(jnp.float32)) + b.astype(jnp.float32)
        h = jnp.where(a > 0, a, 0.01 * a)   # leaky_relu on every layer (incl. last)
    return h.astype(x.dtype)


if __name__ == "__main__":
    # CalibNet(input_size=32, output_size=16, edepth=2, ewidths=32).forward(x)
    B, input_size, ewidths, edepth, output_size = 8, 32, 32, 2, 16

    key = jax.random.PRNGKey(0)
    key, xk = jax.random.split(key)
    x = jax.random.normal(xk, (B, input_size), jnp.float32)
    weights, biases = init_mlp_params(key, input_size, ewidths, edepth, output_size)

    out = jax.block_until_ready(calibnet_forward(x, weights, biases))
    assert out.shape == (B, output_size)

    ref = ref_forward(x, weights, biases)
    assert jnp.allclose(out, ref, atol=2e-2, rtol=2e-2)

    # Second call: multi-step "parallel" grid (pipelined batch tiles, megacore).
    B2 = 1024
    x2 = jax.random.normal(jax.random.PRNGKey(1), (B2, input_size), jnp.float32)
    out2 = jax.block_until_ready(calibnet_forward(x2, weights, biases,
                                                  batch_tile=256))
    ref2 = ref_forward(x2, weights, biases)
    assert out2.shape == (B2, output_size)
    assert jnp.allclose(out2, ref2, atol=2e-2, rtol=2e-2)

    # Third call: default tile selection (>=2 grid steps -> both v7x TCs busy).
    out3 = jax.block_until_ready(calibnet_forward(x2, weights, biases))
    assert out3.shape == (B2, output_size)
    assert jnp.allclose(out3, ref2, atol=2e-2, rtol=2e-2)

    print("KERNEL_OK")
</pallas_src>

<mosaic_0001>
module attributes {stable_mosaic.version = 11 : i64} {
  func.func @_mlp_kernel(%arg0: i32, %arg1: memref<8x32xf32, #tpu.memory_space<vmem>>, %arg2: memref<32x32xf32, #tpu.memory_space<vmem>>, %arg3: memref<1x32xf32, #tpu.memory_space<vmem>>, %arg4: memref<32x32xf32, #tpu.memory_space<vmem>>, %arg5: memref<1x32xf32, #tpu.memory_space<vmem>>, %arg6: memref<32x16xf32, #tpu.memory_space<vmem>>, %arg7: memref<1x16xf32, #tpu.memory_space<vmem>>, %arg8: memref<8x16xf32, #tpu.memory_space<vmem>>) attributes {dimension_semantics = [#tpu.dimension_semantics<parallel>], iteration_bounds = array<i64: 1>, scalar_prefetch = 0 : i64, scratch_operands = 0 : i64, tpu.core_type = #tpu.core_type<tc>, window_params = [{transform_indices = @transform_0, window_bounds = array<i64: 8, 32>}, {pipeline_mode = #tpu.pipeline_mode<synchronous>, transform_indices = @transform_1, window_bounds = array<i64: 32, 32>}, {pipeline_mode = #tpu.pipeline_mode<synchronous>, transform_indices = @transform_2, window_bounds = array<i64: 1, 32>}, {pipeline_mode = #tpu.pipeline_mode<synchronous>, transform_indices = @transform_3, window_bounds = array<i64: 32, 32>}, {pipeline_mode = #tpu.pipeline_mode<synchronous>, transform_indices = @transform_4, window_bounds = array<i64: 1, 32>}, {pipeline_mode = #tpu.pipeline_mode<synchronous>, transform_indices = @transform_5, window_bounds = array<i64: 32, 16>}, {pipeline_mode = #tpu.pipeline_mode<synchronous>, transform_indices = @transform_6, window_bounds = array<i64: 1, 16>}, {transform_indices = @transform_7, window_bounds = array<i64: 8, 16>}]} {
    %c0 = arith.constant 0 : index
    %c0_0 = arith.constant 0 : index
    %0 = vector.load %arg1[%c0, %c0_0] : memref<8x32xf32, #tpu.memory_space<vmem>>, vector<8x32xf32>
    %c0_1 = arith.constant 0 : index
    %c0_2 = arith.constant 0 : index
    %1 = vector.load %arg2[%c0_1, %c0_2] : memref<32x32xf32, #tpu.memory_space<vmem>>, vector<32x32xf32>
    %c0_3 = arith.constant 0 : index
    %c0_4 = arith.constant 0 : index
    %2 = vector.load %arg3[%c0_3, %c0_4] : memref<1x32xf32, #tpu.memory_space<vmem>>, vector<1x32xf32>
    %cst = arith.constant dense<0.000000e+00> : vector<8x32xf32>
    %3 = tpu.matmul %0, %1, %cst {dimension_numbers = #tpu.dot_dimension_numbers<[1], [0], [0], [1], [0, 0, 1, 1], [], []>} : vector<8x32xf32>, vector<32x32xf32>, vector<8x32xf32> -> vector<8x32xf32>
    %4 = vector.broadcast %2 : vector<1x32xf32> to vector<8x32xf32>
    %5 = arith.addf %3, %4 : vector<8x32xf32>
    %cst_5 = arith.constant 0.000000e+00 : f32
    %6 = vector.broadcast %cst_5 : f32 to vector<8x32xf32>
    %7 = arith.cmpf ogt, %5, %6 : vector<8x32xf32>
    %cst_6 = arith.constant 0.00999999977 : f32
    %8 = vector.broadcast %cst_6 : f32 to vector<8x32xf32>
    %9 = arith.mulf %8, %5 : vector<8x32xf32>
    %10 = arith.select %7, %5, %9 : vector<8x32xi1>, vector<8x32xf32>
    %c0_7 = arith.constant 0 : index
    %c0_8 = arith.constant 0 : index
    %11 = vector.load %arg4[%c0_7, %c0_8] : memref<32x32xf32, #tpu.memory_space<vmem>>, vector<32x32xf32>
    %c0_9 = arith.constant 0 : index
    %c0_10 = arith.constant 0 : index
    %12 = vector.load %arg5[%c0_9, %c0_10] : memref<1x32xf32, #tpu.memory_space<vmem>>, vector<1x32xf32>
    %cst_11 = arith.constant dense<0.000000e+00> : vector<8x32xf32>
    %13 = tpu.matmul %10, %11, %cst_11 {dimension_numbers = #tpu.dot_dimension_numbers<[1], [0], [0], [1], [0, 0, 1, 1], [], []>} : vector<8x32xf32>, vector<32x32xf32>, vector<8x32xf32> -> vector<8x32xf32>
    %14 = vector.broadcast %12 : vector<1x32xf32> to vector<8x32xf32>
    %15 = arith.addf %13, %14 : vector<8x32xf32>
    %cst_12 = arith.constant 0.000000e+00 : f32
    %16 = vector.broadcast %cst_12 : f32 to vector<8x32xf32>
    %17 = arith.cmpf ogt, %15, %16 : vector<8x32xf32>
    %cst_13 = arith.constant 0.00999999977 : f32
    %18 = vector.broadcast %cst_13 : f32 to vector<8x32xf32>
    %19 = arith.mulf %18, %15 : vector<8x32xf32>
    %20 = arith.select %17, %15, %19 : vector<8x32xi1>, vector<8x32xf32>
    %c0_14 = arith.constant 0 : index
    %c0_15 = arith.constant 0 : index
    %21 = vector.load %arg6[%c0_14, %c0_15] : memref<32x16xf32, #tpu.memory_space<vmem>>, vector<32x16xf32>
    %c0_16 = arith.constant 0 : index
    %c0_17 = arith.constant 0 : index
    %22 = vector.load %arg7[%c0_16, %c0_17] : memref<1x16xf32, #tpu.memory_space<vmem>>, vector<1x16xf32>
    %cst_18 = arith.constant dense<0.000000e+00> : vector<8x16xf32>
    %23 = tpu.matmul %20, %21, %cst_18 {dimension_numbers = #tpu.dot_dimension_numbers<[1], [0], [0], [1], [0, 0, 1, 1], [], []>} : vector<8x32xf32>, vector<32x16xf32>, vector<8x16xf32> -> vector<8x16xf32>
    %24 = vector.broadcast %22 : vector<1x16xf32> to vector<8x16xf32>
    %25 = arith.addf %23, %24 : vector<8x16xf32>
    %cst_19 = arith.constant 0.000000e+00 : f32
    %26 = vector.broadcast %cst_19 : f32 to vector<8x16xf32>
    %27 = arith.cmpf ogt, %25, %26 : vector<8x16xf32>
    %cst_20 = arith.constant 0.00999999977 : f32
    %28 = vector.broadcast %cst_20 : f32 to vector<8x16xf32>
    %29 = arith.mulf %28, %25 : vector<8x16xf32>
    %30 = arith.select %27, %25, %29 : vector<8x16xi1>, vector<8x16xf32>
    %c0_21 = arith.constant 0 : index
    %c0_22 = arith.constant 0 : index
    %31 = vector.load %arg8[%c0_21, %c0_22] : memref<8x16xf32, #tpu.memory_space<vmem>>, vector<8x16xf32>
    tpu.vector_store %arg8[%c0_21, %c0_22], %30 {strides = array<i32>} : memref<8x16xf32, #tpu.memory_space<vmem>>, vector<8x16xf32>,
    return
  }
  func.func @transform_0(%arg0: i32) -> (i32, i32) {
    %c0_i32 = arith.constant 0 : i32
    %c0_i32_0 = arith.constant 0 : i32
    return %arg0, %c0_i32 : i32, i32
  }
  func.func @transform_1(%arg0: i32) -> (i32, i32) {
    %c0_i32 = arith.constant 0 : i32
    %c0_i32_0 = arith.constant 0 : i32
    %c0_i32_1 = arith.constant 0 : i32
    return %c0_i32, %c0_i32_0 : i32, i32
  }
  func.func @transform_2(%arg0: i32) -> (i32, i32) {
    %c0_i32 = arith.constant 0 : i32
    %c0_i32_0 = arith.constant 0 : i32
    %c0_i32_1 = arith.constant 0 : i32
    return %c0_i32, %c0_i32_0 : i32, i32
  }
  func.func @transform_3(%arg0: i32) -> (i32, i32) {
    %c0_i32 = arith.constant 0 : i32
    %c0_i32_0 = arith.constant 0 : i32
    %c0_i32_1 = arith.constant 0 : i32
    return %c0_i32, %c0_i32_0 : i32, i32
  }
  func.func @transform_4(%arg0: i32) -> (i32, i32) {
    %c0_i32 = arith.constant 0 : i32
    %c0_i32_0 = arith.constant 0 : i32
    %c0_i32_1 = arith.constant 0 : i32
    return %c0_i32, %c0_i32_0 : i32, i32
  }
  func.func @transform_5(%arg0: i32) -> (i32, i32) {
    %c0_i32 = arith.constant 0 : i32
    %c0_i32_0 = arith.constant 0 : i32
    %c0_i32_1 = arith.constant 0 : i32
    return %c0_i32, %c0_i32_0 : i32, i32
  }
  func.func @transform_6(%arg0: i32) -> (i32, i32) {
    %c0_i32 = arith.constant 0 : i32
    %c0_i32_0 = arith.constant 0 : i32
    %c0_i32_1 = arith.constant 0 : i32
    return %c0_i32, %c0_i32_0 : i32, i32
  }
  func.func @transform_7(%arg0: i32) -> (i32, i32) {
    %c0_i32 = arith.constant 0 : i32
    %c0_i32_0 = arith.constant 0 : i32
    return %arg0, %c0_i32 : i32, i32
  }
}

</mosaic_0001>

<llo_original>
// kernel: tpu_custom_call.1
$region0: #{tpu_custom_call.1}
  #allocation0 [shape = 'u32[]', space=smem, size = 0x4, offset = 0x4, fixed_abs, tag = 'smem constant byte address 0x4 - core index']
  #allocation1 [shape = 'u32[144,128]{1,0:T(1,128)}', space=vmem, size = 0x12000, scoped, tag = 'internal scratch']
  %s0 = inlined_call_operand.vmem [shape: f32[8,32], index: 0, kind: input, shape index: {}]
  %s1 = inlined_call_operand.vmem [shape: f32[32,32], index: 1, kind: input, shape index: {}]
  %s2 = inlined_call_operand.vmem [shape: f32[1,32], index: 2, kind: input, shape index: {}]
  %s3 = inlined_call_operand.hbm [shape: f32[32,32], index: 3, kind: input, shape index: {}]
  %s4 = inlined_call_operand.vmem [shape: f32[1,32], index: 4, kind: input, shape index: {}]
  %s5 = inlined_call_operand.vmem [shape: f32[32,16], index: 5, kind: input, shape index: {}]
  %s6 = inlined_call_operand.vmem [shape: f32[1,16], index: 6, kind: input, shape index: {}]
  %s7 = inlined_call_operand.hbm [shape: f32[8,16], index: 7, kind: output, shape index: {}]
  %s8 = sld [smem:[#allocation0]]
  $region42: #{tpu_custom_call.1} parent=0
    _
  %s10 = ssub.s32 1, %s8
  %s11 = scalar_select 0, %s10, %s8
  $region1: #{tpu_custom_call.1} parent=0
    #allocation2 [shape = 'u8[16384]{0}', space=vmem, size = 0x4000, scoped, tag = 'input window, operand 3, single buffered']
    #allocation3 [shape = 's32[1]{0}', space=sflag, size = 0x4, scoped, tag = 'scoped memory for tpu_custom_call.1']
    #allocation4 [shape = 's32[1]{0}', space=sflag, size = 0x4, scoped, tag = 'scoped memory for tpu_custom_call.1']
    #allocation5 [shape = 'u8[4096]{0}', space=vmem, size = 0x1000, scoped, tag = 'output window, operand 0, single buffered']
    %12 = vsyncpa [#allocation3], 0
    %13 = vsyncpa [#allocation4], 0
    // Predicated region
    $region2: #{tpu_custom_call.1} parent=1 // pred_check
      _
    $region3: #{tpu_custom_call.1} parent=1 // pred_check_branch
      %15 = sbr.rel (0) target = $region5
    $region4: #{tpu_custom_call.1} parent=1 // pred_region
      _
    $region5: #{tpu_custom_call.1} parent=1 // pred_fallthru
      _
    // Predicated region
    $region6: #{tpu_custom_call.1} parent=1 // pred_check
      _
    $region7: #{tpu_custom_call.1} parent=1 // pred_check_branch
      %17 = sbr.rel (0) target = $region9
    $region8: #{tpu_custom_call.1} parent=1 // pred_region
      _
    $region9: #{tpu_custom_call.1} parent=1 // pred_fallthru
      _
    // Predicated region
    $region10: #{tpu_custom_call.1} parent=1 // pred_check
      _
    $region11: #{tpu_custom_call.1} parent=1 // pred_check_branch
      %19 = sbr.rel (0) target = $region13
    $region12: #{tpu_custom_call.1} parent=1 // pred_region
      _
    $region13: #{tpu_custom_call.1} parent=1 // pred_fallthru
      _
    // Predicated region
    $region14: #{tpu_custom_call.1} parent=1 // pred_check
      _
    $region15: #{tpu_custom_call.1} parent=1 // pred_check_branch
      %21 = sbr.rel (0) target = $region17
    $region16: #{tpu_custom_call.1} parent=1 // pred_region
      %s23 = ssub.s32 512, 512
      %24 = vsyncadd [#allocation3], %s23
      %s25 = sshll.u32 [#allocation2], 4
      %s26 = int_to_ptr.vmem [resolvable:$true] %s25
      %31 = dma.hbm_to_vmem [thread:$0]  %s3, 512, %s26, [#allocation3], 128, 128, 8
    $region17: #{tpu_custom_call.1} parent=1 // pred_fallthru
      _
    // Predicated region
    $region18: #{tpu_custom_call.1} parent=1 // pred_check
      _
    $region19: #{tpu_custom_call.1} parent=1 // pred_check_branch
      %33 = sbr.rel (0) target = $region21
    $region20: #{tpu_custom_call.1} parent=1 // pred_region
      _
    $region21: #{tpu_custom_call.1} parent=1 // pred_fallthru
      _
    // Predicated region
    $region22: #{tpu_custom_call.1} parent=1 // pred_check
      _
    $region23: #{tpu_custom_call.1} parent=1 // pred_check_branch
      %35 = sbr.rel (0) target = $region25
    $region24: #{tpu_custom_call.1} parent=1 // pred_region
      _
    $region25: #{tpu_custom_call.1} parent=1 // pred_fallthru
      _
    // Predicated region
    $region26: #{tpu_custom_call.1} parent=1 // pred_check
      _
    $region27: #{tpu_custom_call.1} parent=1 // pred_check_branch
      %37 = sbr.rel (0) target = $region29
    $region28: #{tpu_custom_call.1} parent=1 // pred_region
      _
    $region29: #{tpu_custom_call.1} parent=1 // pred_fallthru
      _
    // Predicated region
    $region30: #{tpu_custom_call.1} parent=1 // pred_check
      _
    $region31: #{tpu_custom_call.1} parent=1 // pred_check_branch
      %39 = sbr.rel (0) target = $region33
    $region32: #{tpu_custom_call.1} parent=1 // pred_region
      %40 = dma.done [#allocation3], 512
    $region33: #{tpu_custom_call.1} parent=1 // pred_fallthru
      _
    %v41 = vld [vmem:[%s0] sm:$0xff]
    %v42 = vld [vmem:[%s1] sm:$0xff]
    %v43 = vld [vmem:[%s1 + $0x8] sm:$0xff]
    %v44 = vld [vmem:[%s1 + $0x10] sm:$0xff]
    %v45 = vld [vmem:[%s1 + $0x18] sm:$0xff]
    %v46 = vld [vmem:[%s2] sm:$0x1]
    %v48 = vlaneseq
    %v49 = vshrl.u32 %v48, 7
    %v50 = vsub.s32 0, %v49
    %v51 = vrot.slane %v46, %v50
    %vm53 = vcmask 261120
    %v55 = vsel %vm53, %v41, 0
    %57 = vmatprep.subr.mxu0 0.0
    %58 = vmatpush1.msra.mxu0 %v42
    %59 = vmatprep.subr.mxu0 0.0
    %60 = vmatpush1.msra.mxu0 %v43
    %61 = vmatprep.subr.mxu0 0.0
    %62 = vmatpush1.msra.mxu0 %v44
    %63 = vmatprep.subr.mxu0 0.0
    %64 = vmatpush1.msra.mxu0 %v45
    %65 = vmatprep.subr.mxu0 0.0
    %66 = vmatpush1.msra.mxu0 0.0
    %67 = vmatprep.subr.mxu0 0.0
    %68 = vmatpush1.msra.mxu0 0.0
    %69 = vmatprep.subr.mxu0 0.0
    %70 = vmatpush1.msra.mxu0 0.0
    %71 = vmatprep.subr.mxu0 0.0
    %72 = vmatpush1.msra.mxu0 0.0
    %73 = vmatprep.subr.mxu0 0.0
    %74 = vmatpush1.msra.mxu0 0.0
    %75 = vmatprep.subr.mxu0 0.0
    %76 = vmatpush1.msra.mxu0 0.0
    %77 = vmatprep.subr.mxu0 0.0
    %78 = vmatpush1.msra.mxu0 0.0
    %79 = vmatprep.subr.mxu0 0.0
    %80 = vmatpush1.msra.mxu0 0.0
    %81 = vmatprep.subr.mxu0 0.0
    %82 = vmatpush1.msra.mxu0 0.0
    %83 = vmatprep.subr.mxu0 0.0
    %84 = vmatpush1.msra.mxu0 0.0
    %85 = vmatprep.subr.mxu0 0.0
    %86 = vmatpush1.msra.mxu0 0.0
    %87 = vmatprep.subr.mxu0 0.0
    %88 = vmatpush1.msra.mxu0 0.0
    %89 = vmatprep.subr.mxu0 0.0
    %90 = vmatpush1.msra.mxu0 0.0
    %91 = vmatprep.subr.mxu0 0.0
    %92 = vmatpush1.msra.mxu0 0.0
    %93 = vmatprep.subr.mxu0 0.0
    %94 = vmatpush1.msra.mxu0 0.0
    %95 = vmatprep.subr.mxu0 0.0
    %96 = vmatpush1.msra.mxu0 0.0
    %97 = vmatprep.subr.mxu0 0.0
    %98 = vmatpush1.msra.mxu0 0.0
    %99 = vmatprep.subr.mxu0 0.0
    %100 = vmatpush1.msra.mxu0 0.0
    %101 = vmatprep.subr.mxu0 0.0
    %102 = vmatpush1.msra.mxu0 0.0
    %103 = vmatprep.subr.mxu0 0.0
    %104 = vmatpush1.msra.mxu0 0.0
    %105 = vmatprep.subr.mxu0 0.0
    %106 = vmatpush1.msra.mxu0 0.0
    %107 = vmatprep.subr.mxu0 0.0
    %108 = vmatpush1.msra.mxu0 0.0
    %109 = vmatprep.subr.mxu0 0.0
    %110 = vmatpush1.msra.mxu0 0.0
    %111 = vmatprep.subr.mxu0 0.0
    %112 = vmatpush1.msra.mxu0 0.0
    %113 = vmatprep.subr.mxu0 0.0
    %114 = vmatpush1.msra.mxu0 0.0
    %115 = vmatprep.subr.mxu0 0.0
    %116 = vmatpush1.msra.mxu0 0.0
    %117 = vmatprep.subr.mxu0 0.0
    %118 = vmatpush1.msra.mxu0 0.0
    %119 = vmatprep.subr.mxu0 0.0
    %120 = vmatpush1.msra.mxu0 0.0
    %121 = vmatprep.mubr.f32.mxu0 0.0
    %122 = vmatmul.mubr.f32.gmra.mrb[0].mxu0 %v55
    %v123 = vpop.f32.mrb[0].mxu0
    %v124 = vadd.f32 %v51, %v123
    %v125 = vpop.f32.mrb[0].mxu0
    %126 = vdwg.mxu0
    %vm127 = vcmp.gt.f32.partialorder %v124, 0.0
    %v128 = vmul.f32 %v124, 0.01
    %v129 = vsel %vm127, %v124, %v128
    %v130 = vld [vmem:[#allocation2] sm:$0xff]
    %v131 = vld [vmem:[#allocation2 + $0x8] sm:$0xff]
    %v132 = vld [vmem:[#allocation2 + $0x10] sm:$0xff]
    %v133 = vld [vmem:[#allocation2 + $0x18] sm:$0xff]
    %v134 = vld [vmem:[%s4] sm:$0x1]
    %v136 = vlaneseq
    %v137 = vshrl.u32 %v136, 7
    %v138 = vsub.s32 0, %v137
    %v139 = vrot.slane %v134, %v138
    %v142 = vsel %vm53, %v129, 0
    %144 = vmatprep.subr.mxu0 0.0
    %145 = vmatpush1.msra.mxu0 %v130
    %146 = vmatprep.subr.mxu0 0.0
    %147 = vmatpush1.msra.mxu0 %v131
    %148 = vmatprep.subr.mxu0 0.0
    %149 = vmatpush1.msra.mxu0 %v132
    %150 = vmatprep.subr.mxu0 0.0
    %151 = vmatpush1.msra.mxu0 %v133
    %152 = vmatprep.subr.mxu0 0.0
    %153 = vmatpush1.msra.mxu0 0.0
    %154 = vmatprep.subr.mxu0 0.0
    %155 = vmatpush1.msra.mxu0 0.0
    %156 = vmatprep.subr.mxu0 0.0
    %157 = vmatpush1.msra.mxu0 0.0
    %158 = vmatprep.subr.mxu0 0.0
    %159 = vmatpush1.msra.mxu0 0.0
    %160 = vmatprep.subr.mxu0 0.0
    %161 = vmatpush1.msra.mxu0 0.0
    %162 = vmatprep.subr.mxu0 0.0
    %163 = vmatpush1.msra.mxu0 0.0
    %164 = vmatprep.subr.mxu0 0.0
    %165 = vmatpush1.msra.mxu0 0.0
    %166 = vmatprep.subr.mxu0 0.0
    %167 = vmatpush1.msra.mxu0 0.0
    %168 = vmatprep.subr.mxu0 0.0
    %169 = vmatpush1.msra.mxu0 0.0
    %170 = vmatprep.subr.mxu0 0.0
    %171 = vmatpush1.msra.mxu0 0.0
    %172 = vmatprep.subr.mxu0 0.0
    %173 = vmatpush1.msra.mxu0 0.0
    %174 = vmatprep.subr.mxu0 0.0
    %175 = vmatpush1.msra.mxu0 0.0
    %176 = vmatprep.subr.mxu0 0.0
    %177 = vmatpush1.msra.mxu0 0.0
    %178 = vmatprep.subr.mxu0 0.0
    %179 = vmatpush1.msra.mxu0 0.0
    %180 = vmatprep.subr.mxu0 0.0
    %181 = vmatpush1.msra.mxu0 0.0
    %182 = vmatprep.subr.mxu0 0.0
    %183 = vmatpush1.msra.mxu0 0.0
    %184 = vmatprep.subr.mxu0 0.0
    %185 = vmatpush1.msra.mxu0 0.0
    %186 = vmatprep.subr.mxu0 0.0
    %187 = vmatpush1.msra.mxu0 0.0
    %188 = vmatprep.subr.mxu0 0.0
    %189 = vmatpush1.msra.mxu0 0.0
    %190 = vmatprep.subr.mxu0 0.0
    %191 = vmatpush1.msra.mxu0 0.0
    %192 = vmatprep.subr.mxu0 0.0
    %193 = vmatpush1.msra.mxu0 0.0
    %194 = vmatprep.subr.mxu0 0.0
    %195 = vmatpush1.msra.mxu0 0.0
    %196 = vmatprep.subr.mxu0 0.0
    %197 = vmatpush1.msra.mxu0 0.0
    %198 = vmatprep.subr.mxu0 0.0
    %199 = vmatpush1.msra.mxu0 0.0
    %200 = vmatprep.subr.mxu0 0.0
    %201 = vmatpush1.msra.mxu0 0.0
    %202 = vmatprep.subr.mxu0 0.0
    %203 = vmatpush1.msra.mxu0 0.0
    %204 = vmatprep.subr.mxu0 0.0
    %205 = vmatpush1.msra.mxu0 0.0
    %206 = vmatprep.subr.mxu0 0.0
    %207 = vmatpush1.msra.mxu0 0.0
    %208 = vmatprep.mubr.f32.mxu0 0.0
    %209 = vmatmul.mubr.f32.gmra.mrb[0].mxu0 %v142
    %v210 = vpop.f32.mrb[0].mxu0
    %v211 = vadd.f32 %v139, %v210
    %v212 = vpop.f32.mrb[0].mxu0
    %213 = vdwg.mxu0
    %vm214 = vcmp.gt.f32.partialorder %v211, 0.0
    %v215 = vmul.f32 %v211, 0.01
    %v216 = vsel %vm214, %v211, %v215
    %v217 = vld [vmem:[%s5] sm:$0xff]
    %v218 = vld [vmem:[%s5 + $0x8] sm:$0xff]
    %v219 = vld [vmem:[%s5 + $0x10] sm:$0xff]
    %v220 = vld [vmem:[%s5 + $0x18] sm:$0xff]
    %v221 = vld [vmem:[%s6] sm:$0x1]
    %v223 = vlaneseq
    %v224 = vshrl.u32 %v223, 7
    %v225 = vsub.s32 0, %v224
    %v226 = vrot.slane %v221, %v225
    %v229 = vsel %vm53, %v216, 0
    %231 = vmatprep.subr.mxu0 0.0
    %232 = vmatpush1.msra.mxu0 %v217
    %233 = vmatprep.subr.mxu0 0.0
    %234 = vmatpush1.msra.mxu0 %v218
    %235 = vmatprep.subr.mxu0 0.0
    %236 = vmatpush1.msra.mxu0 %v219
    %237 = vmatprep.subr.mxu0 0.0
    %238 = vmatpush1.msra.mxu0 %v220
    %239 = vmatprep.subr.mxu0 0.0
    %240 = vmatpush1.msra.mxu0 0.0
    %241 = vmatprep.subr.mxu0 0.0
    %242 = vmatpush1.msra.mxu0 0.0
    %243 = vmatprep.subr.mxu0 0.0
    %244 = vmatpush1.msra.mxu0 0.0
    %245 = vmatprep.subr.mxu0 0.0
    %246 = vmatpush1.msra.mxu0 0.0
    %247 = vmatprep.subr.mxu0 0.0
    %248 = vmatpush1.msra.mxu0 0.0
    %249 = vmatprep.subr.mxu0 0.0
    %250 = vmatpush1.msra.mxu0 0.0
    %251 = vmatprep.subr.mxu0 0.0
    %252 = vmatpush1.msra.mxu0 0.0
    %253 = vmatprep.subr.mxu0 0.0
    %254 = vmatpush1.msra.mxu0 0.0
    %255 = vmatprep.subr.mxu0 0.0
    %256 = vmatpush1.msra.mxu0 0.0
    %257 = vmatprep.subr.mxu0 0.0
    %258 = vmatpush1.msra.mxu0 0.0
    %259 = vmatprep.subr.mxu0 0.0
    %260 = vmatpush1.msra.mxu0 0.0
    %261 = vmatprep.subr.mxu0 0.0
    %262 = vmatpush1.msra.mxu0 0.0
    %263 = vmatprep.subr.mxu0 0.0
    %264 = vmatpush1.msra.mxu0 0.0
    %265 = vmatprep.subr.mxu0 0.0
    %266 = vmatpush1.msra.mxu0 0.0
    %267 = vmatprep.subr.mxu0 0.0
    %268 = vmatpush1.msra.mxu0 0.0
    %269 = vmatprep.subr.mxu0 0.0
    %270 = vmatpush1.msra.mxu0 0.0
    %271 = vmatprep.subr.mxu0 0.0
    %272 = vmatpush1.msra.mxu0 0.0
    %273 = vmatprep.subr.mxu0 0.0
    %274 = vmatpush1.msra.mxu0 0.0
    %275 = vmatprep.subr.mxu0 0.0
    %276 = vmatpush1.msra.mxu0 0.0
    %277 = vmatprep.subr.mxu0 0.0
    %278 = vmatpush1.msra.mxu0 0.0
    %279 = vmatprep.subr.mxu0 0.0
    %280 = vmatpush1.msra.mxu0 0.0
    %281 = vmatprep.subr.mxu0 0.0
    %282 = vmatpush1.msra.mxu0 0.0
    %283 = vmatprep.subr.mxu0 0.0
    %284 = vmatpush1.msra.mxu0 0.0
    %285 = vmatprep.subr.mxu0 0.0
    %286 = vmatpush1.msra.mxu0 0.0
    %287 = vmatprep.subr.mxu0 0.0
    %288 = vmatpush1.msra.mxu0 0.0
    %289 = vmatprep.subr.mxu0 0.0
    %290 = vmatpush1.msra.mxu0 0.0
    %291 = vmatprep.subr.mxu0 0.0
    %292 = vmatpush1.msra.mxu0 0.0
    %293 = vmatprep.subr.mxu0 0.0
    %294 = vmatpush1.msra.mxu0 0.0
    %295 = vmatprep.mubr.f32.mxu0 0.0
    %296 = vmatmul.mubr.f32.gmra.mrb[0].mxu0 %v229
    %v297 = vpop.f32.mrb[0].mxu0
    %v298 = vadd.f32 %v226, %v297
    %v299 = vpop.f32.mrb[0].mxu0
    %300 = vdwg.mxu0
    %vm301 = vcmp.gt.f32.partialorder %v298, 0.0
    %v302 = vmul.f32 %v298, 0.01
    %v303 = vsel %vm301, %v298, %v302
    %vm304 = vcmask 130048
    %305 = vst.msk [vmem:[#allocation5] sm:$0xff] %vm304, %v303
    // Predicated region
    $region34: #{tpu_custom_call.1} parent=1 // pred_check
      _
    $region35: #{tpu_custom_call.1} parent=1 // pred_check_branch
      %307 = sbr.rel (0) target = $region37
    $region36: #{tpu_custom_call.1} parent=1 // pred_region
      %s309 = ssub.s32 128, 128
      %310 = vsyncadd [#allocation4], %s309
      %s312 = sshll.u32 [#allocation5], 4
      %s313 = int_to_ptr.vmem [resolvable:$true] %s312
      %315 = dma.vmem_to_hbm [thread:$0]  %s313, 128, %s7, [#allocation4]
    $region37: #{tpu_custom_call.1} parent=1 // pred_fallthru
      _
    // Predicated region
    $region38: #{tpu_custom_call.1} parent=1 // pred_check
      _
    $region39: #{tpu_custom_call.1} parent=1 // pred_check_branch
      %317 = sbr.rel (0) target = $region41
    $region40: #{tpu_custom_call.1} parent=1 // pred_region
      %318 = dma.done [#allocation4], 128
    $region41: #{tpu_custom_call.1} parent=1 // pred_fallthru
      _
    %319 = vsyncpa [#allocation3], 1
    %320 = vsyncpa [#allocation4], 1

</llo_original>
